<compile_context>
chip_gen: v6e
topology: v6e:2x2x1
jax: 0.10.0
libtpu: 0.0.40
codegen_flags: <defaults>
</compile_context>

<pallas_src>
import math

import jax
import jax.numpy as jnp
from jax.experimental import pallas as pl
from jax.experimental.pallas import tpu as pltpu


def _row_softmax(logits):
    """Softmax over the last (lane) axis; `logits` already include the mask bias."""
    m = jnp.max(logits, axis=-1, keepdims=True)
    e = jnp.exp(logits - m)
    denom = jnp.sum(e, axis=-1, keepdims=True)
    # Approximate reciprocal runs on the EUP slot (nearly free next to the exp).
    return e * pl.reciprocal(denom, approx=True)


def _cqattention_kernel(c_ref, q_ref, cbias_ref, qbias_ref, w_ref, o_ref):
    # Per-batch-element blocks (batch dim squeezed by the BlockSpecs):
    #   c_ref:     (D, Lc)   context, channel-first (as stored in HBM)
    #   q_ref:     (D, Lq)   question, channel-first
    #   cbias_ref: (1, Lc)   additive mask bias (-1e30 at padded context positions)
    #   qbias_ref: (1, Lq)   additive mask bias (-1e30 at padded question positions)
    #   w_ref:     (3, D)    rows = [w1 (on C), w2 (on Q), w3 (on C*Q)]
    #   o_ref:     (Lc, 4D)  [Ct | A | Ct*A | Ct*Bv], lane-dense
    c_cf = c_ref[...].astype(jnp.float32)           # (D, Lc)
    q_cf = q_ref[...].astype(jnp.float32)           # (D, Lq)
    cbias = cbias_ref[...].astype(jnp.float32)      # (1, Lc)
    qbias = qbias_ref[...].astype(jnp.float32)      # (1, Lq)
    w = w_ref[...].astype(jnp.float32)              # (3, D)
    w1, w2, w3 = w[0:1, :], w[1:2, :], w[2:3, :]    # (1, D) each

    ct = c_cf.T                                     # (Lc, D): one small in-kernel transpose

    # S[i,j] = (ct_i*w3 + w2).q_j + ct_i.w1  ->  one MXU matmul + rank-1 terms.
    lhs = ct * w3 + w2                                              # (Lc, D)
    cw1_col = jnp.sum(ct * w1, axis=-1, keepdims=True)              # (Lc, 1)
    cw1_row = jax.lax.dot_general(                                  # (1, Lc)
        w1, c_cf, (((1,), (0,)), ((), ())),
        preferred_element_type=jnp.float32)

    s_logits = jax.lax.dot_general(                                 # (Lc, Lq) masked logits
        lhs, q_cf, (((1,), (0,)), ((), ())),
        preferred_element_type=jnp.float32) + cw1_col + qbias
    st_logits = jax.lax.dot_general(                                # (Lq, Lc) masked S^T
        q_cf, lhs, (((0,), (1,)), ((), ())),
        preferred_element_type=jnp.float32) + cw1_row + cbias

    s1 = _row_softmax(s_logits)                     # (Lc, Lq): softmax over Lq (lanes)
    s2t = _row_softmax(st_logits)                   # (Lq, Lc): softmax over Lc (lanes) == S2^T

    a = jax.lax.dot_general(                        # (Lc, D)  = S1 @ Qt
        s1, q_cf, (((1,), (1,)), ((), ())),
        preferred_element_type=jnp.float32)
    s2t_ct = jax.lax.dot_general(                   # (Lq, D)  = S2^T @ Ct
        s2t, c_cf, (((1,), (1,)), ((), ())),
        preferred_element_type=jnp.float32)
    b = jnp.dot(s1, s2t_ct,                         # (Lc, D)  = S1 @ (S2^T @ Ct)
                preferred_element_type=jnp.float32)

    # One lane-dense, full-width store of the whole output slab.
    out = jnp.concatenate([ct, a, ct * a, ct * b], axis=-1)         # (Lc, 4D)
    o_ref[...] = out.astype(o_ref.dtype)
    # TODO(synk): F.dropout is identity at inference (training=False); training-mode dropout not implemented.


def cqattention_forward(C, Q, cmask, qmask, w):
    """C: (B, D, Lc), Q: (B, D, Lq), cmask: (B, Lc), qmask: (B, Lq), w: (3*D,)."""
    B, D, Lc = C.shape
    Lq = Q.shape[2]

    # Precomputed additive mask biases (no (1-m) mul / -1e30 mul inside the kernel).
    cbias = (cmask.astype(jnp.float32) * (-1e30)).reshape(B, 1, Lc)
    qbias = (qmask.astype(jnp.float32) * (-1e30)).reshape(B, 1, Lq)
    w_rows = w.astype(jnp.float32).reshape(3, D)                    # [w1; w2; w3]

    out_rows = pl.pallas_call(
        _cqattention_kernel,
        out_shape=jax.ShapeDtypeStruct((B, Lc, 4 * D), C.dtype),
        grid_spec=pltpu.PrefetchScalarGridSpec(
            num_scalar_prefetch=0,
            grid=(B,),                                              # one batch element per step
            in_specs=[
                pl.BlockSpec((None, D, Lc), lambda b: (b, 0, 0)),   # C, channel-first (no wrapper transpose)
                pl.BlockSpec((None, D, Lq), lambda b: (b, 0, 0)),   # Q, channel-first (no wrapper transpose)
                pl.BlockSpec((None, 1, Lc), lambda b: (b, 0, 0)),   # cbias
                pl.BlockSpec((None, 1, Lq), lambda b: (b, 0, 0)),   # qbias
                pl.BlockSpec((3, D), lambda b: (0, 0)),             # w (grid-invariant)
            ],
            out_specs=pl.BlockSpec((None, Lc, 4 * D), lambda b: (b, 0, 0)),
        ),
        compiler_params=pltpu.CompilerParams(
            dimension_semantics=("parallel",),                      # batch steps shard across v7x TCs
        ),
    )(C, Q, cbias, qbias, w_rows)

    # The module contract requires channel-first (B, 4D, Lc); the kernel stores a
    # lane-dense (Lc, 4D) slab, so this single layout transpose stays in the wrapper.
    return jnp.transpose(out_rows, (0, 2, 1))


def cqattention_ref(C, Q, cmask, qmask, w):
    """Pure-JAX mirror of the PyTorch forward (eval mode)."""
    Ct = jnp.transpose(C, (0, 2, 1))                                # (B, Lc, D)
    Qt = jnp.transpose(Q, (0, 2, 1))                                # (B, Lq, D)
    Bsz, Lc, D = Ct.shape
    Lq = Qt.shape[1]
    cm = cmask[:, :, None]                                          # (B, Lc, 1)
    qm = qmask[:, None, :]                                          # (B, 1, Lq)
    Cte = jnp.broadcast_to(Ct[:, :, None, :], (Bsz, Lc, Lq, D))
    Qte = jnp.broadcast_to(Qt[:, None, :, :], (Bsz, Lc, Lq, D))
    S = jnp.concatenate([Cte, Qte, Cte * Qte], axis=3) @ w          # (B, Lc, Lq)

    def mask_logits(t, m):
        return t * (1.0 - m) + m * (-1e30)

    S1 = jax.nn.softmax(mask_logits(S, qm), axis=2)
    S2 = jax.nn.softmax(mask_logits(S, cm), axis=1)
    A = jnp.einsum("bij,bjd->bid", S1, Qt)
    Bv = jnp.einsum("bik,bkd->bid", jnp.einsum("bij,bkj->bik", S1, S2), Ct)
    out = jnp.concatenate([Ct, A, Ct * A, Ct * Bv], axis=2)         # (B, Lc, 4D)
    return jnp.transpose(out, (0, 2, 1))                            # (B, 4D, Lc)


if __name__ == "__main__":
    B, D_MODEL, LC, LQ = 2, 32, 16, 8

    key = jax.random.PRNGKey(0)
    k_c, k_q, k_w = jax.random.split(key, 3)
    C = jax.random.normal(k_c, (B, D_MODEL, LC), dtype=jnp.float32)
    Q = jax.random.normal(k_q, (B, D_MODEL, LQ), dtype=jnp.float32)
    lim = math.sqrt(1.0 / D_MODEL)
    w = jax.random.uniform(k_w, (3 * D_MODEL,), jnp.float32, -lim, lim)

    # Padding masks (1.0 = padded), matching the PyTorch mask convention.
    c_len = jnp.array([LC, LC - 4])
    q_len = jnp.array([LQ, LQ - 3])
    cmask = (jnp.arange(LC)[None, :] >= c_len[:, None]).astype(jnp.float32)
    qmask = (jnp.arange(LQ)[None, :] >= q_len[:, None]).astype(jnp.float32)

    out = cqattention_forward(C, Q, cmask, qmask, w)
    out = jax.block_until_ready(out)

    ref = cqattention_ref(C, Q, cmask, qmask, w)
    assert out.shape == (B, 4 * D_MODEL, LC)
    err = float(jnp.max(jnp.abs(out - ref)))
    # Tolerance loosened slightly vs. exact math because the softmax denominators use
    # the EUP approximate reciprocal (pl.reciprocal(..., approx=True)).
    assert jnp.allclose(out, ref, atol=1e-2, rtol=1e-2), f"mismatch vs reference (max abs err {err})"

    print("KERNEL_OK")
</pallas_src>

<mosaic_0001>
module attributes {stable_mosaic.version = 11 : i64} {
  func.func @_cqattention_kernel(%arg0: i32, %arg1: memref<1x32x16xf32, #tpu.memory_space<vmem>>, %arg2: memref<1x32x8xf32, #tpu.memory_space<vmem>>, %arg3: memref<1x1x16xf32, #tpu.memory_space<vmem>>, %arg4: memref<1x1x8xf32, #tpu.memory_space<vmem>>, %arg5: memref<3x32xf32, #tpu.memory_space<vmem>>, %arg6: memref<1x16x128xf32, #tpu.memory_space<vmem>>) attributes {dimension_semantics = [#tpu.dimension_semantics<parallel>], iteration_bounds = array<i64: 2>, scalar_prefetch = 0 : i64, scratch_operands = 0 : i64, tpu.core_type = #tpu.core_type<tc>, window_params = [{transform_indices = @transform_0, window_bounds = array<i64: 1, 32, 16>}, {transform_indices = @transform_1, window_bounds = array<i64: 1, 32, 8>}, {transform_indices = @transform_2, window_bounds = array<i64: 1, 1, 16>}, {transform_indices = @transform_3, window_bounds = array<i64: 1, 1, 8>}, {pipeline_mode = #tpu.pipeline_mode<synchronous>, transform_indices = @transform_4, window_bounds = array<i64: 3, 32>}, {transform_indices = @transform_5, window_bounds = array<i64: 1, 16, 128>}]} {
    %c0 = arith.constant 0 : index
    %c0_0 = arith.constant 0 : index
    %c0_1 = arith.constant 0 : index
    %0 = vector.load %arg1[%c0, %c0_0, %c0_1] : memref<1x32x16xf32, #tpu.memory_space<vmem>>, vector<1x32x16xf32>
    %1 = vector.shape_cast %0 : vector<1x32x16xf32> to vector<32x16xf32>
    %c0_2 = arith.constant 0 : index
    %c0_3 = arith.constant 0 : index
    %c0_4 = arith.constant 0 : index
    %2 = vector.load %arg2[%c0_2, %c0_3, %c0_4] : memref<1x32x8xf32, #tpu.memory_space<vmem>>, vector<1x32x8xf32>
    %3 = vector.shape_cast %2 : vector<1x32x8xf32> to vector<32x8xf32>
    %c0_5 = arith.constant 0 : index
    %c0_6 = arith.constant 0 : index
    %c0_7 = arith.constant 0 : index
    %4 = vector.load %arg3[%c0_5, %c0_6, %c0_7] : memref<1x1x16xf32, #tpu.memory_space<vmem>>, vector<1x1x16xf32>
    %5 = vector.shape_cast %4 : vector<1x1x16xf32> to vector<1x16xf32>
    %c0_8 = arith.constant 0 : index
    %c0_9 = arith.constant 0 : index
    %c0_10 = arith.constant 0 : index
    %6 = vector.load %arg4[%c0_8, %c0_9, %c0_10] : memref<1x1x8xf32, #tpu.memory_space<vmem>>, vector<1x1x8xf32>
    %7 = vector.shape_cast %6 : vector<1x1x8xf32> to vector<1x8xf32>
    %c0_11 = arith.constant 0 : index
    %c0_12 = arith.constant 0 : index
    %8 = vector.load %arg5[%c0_11, %c0_12] : memref<3x32xf32, #tpu.memory_space<vmem>>, vector<3x32xf32>
    %9 = vector.extract_strided_slice %8 {offsets = [0, 0], sizes = [1, 32], strides = [1, 1]} : vector<3x32xf32> to vector<1x32xf32>
    %10 = vector.extract_strided_slice %8 {offsets = [1, 0], sizes = [1, 32], strides = [1, 1]} : vector<3x32xf32> to vector<1x32xf32>
    %11 = vector.extract_strided_slice %8 {offsets = [2, 0], sizes = [1, 32], strides = [1, 1]} : vector<3x32xf32> to vector<1x32xf32>
    %12 = tpu.transpose %1, [1, 0] : vector<32x16xf32> -> vector<16x32xf32>
    %13 = vector.broadcast %11 : vector<1x32xf32> to vector<16x32xf32>
    %14 = arith.mulf %12, %13 : vector<16x32xf32>
    %15 = vector.broadcast %10 : vector<1x32xf32> to vector<16x32xf32>
    %16 = arith.addf %14, %15 : vector<16x32xf32>
    %17 = vector.broadcast %9 : vector<1x32xf32> to vector<16x32xf32>
    %18 = arith.mulf %12, %17 : vector<16x32xf32>
    %cst = arith.constant dense<0.000000e+00> : vector<16xf32>
    %19 = vector.multi_reduction <add>, %18, %cst [1] : vector<16x32xf32> to vector<16xf32>
    %20 = vector.shape_cast %19 : vector<16xf32> to vector<16x1xf32>
    %cst_13 = arith.constant dense<0.000000e+00> : vector<1x16xf32>
    %21 = tpu.matmul %9, %1, %cst_13 {dimension_numbers = #tpu.dot_dimension_numbers<[1], [0], [0], [1], [0, 0, 1, 1], [], []>} : vector<1x32xf32>, vector<32x16xf32>, vector<1x16xf32> -> vector<1x16xf32>
    %cst_14 = arith.constant dense<0.000000e+00> : vector<16x8xf32>
    %22 = tpu.matmul %16, %3, %cst_14 {dimension_numbers = #tpu.dot_dimension_numbers<[1], [0], [0], [1], [0, 0, 1, 1], [], []>} : vector<16x32xf32>, vector<32x8xf32>, vector<16x8xf32> -> vector<16x8xf32>
    %23 = vector.broadcast %20 : vector<16x1xf32> to vector<16x8xf32>
    %24 = arith.addf %22, %23 : vector<16x8xf32>
    %25 = vector.broadcast %7 : vector<1x8xf32> to vector<16x8xf32>
    %26 = arith.addf %24, %25 : vector<16x8xf32>
    %cst_15 = arith.constant dense<0.000000e+00> : vector<8x16xf32>
    %27 = tpu.matmul %3, %16, %cst_15 {dimension_numbers = #tpu.dot_dimension_numbers<[0], [1], [1], [0], [0, 1, 1, 0], [], []>} : vector<32x8xf32>, vector<16x32xf32>, vector<8x16xf32> -> vector<8x16xf32>
    %28 = vector.broadcast %21 : vector<1x16xf32> to vector<8x16xf32>
    %29 = arith.addf %27, %28 : vector<8x16xf32>
    %30 = vector.broadcast %5 : vector<1x16xf32> to vector<8x16xf32>
    %31 = arith.addf %29, %30 : vector<8x16xf32>
    %cst_16 = arith.constant dense<0xFF800000> : vector<16xf32>
    %32 = vector.multi_reduction <maximumf>, %26, %cst_16 [1] : vector<16x8xf32> to vector<16xf32>
    %33 = vector.shape_cast %32 : vector<16xf32> to vector<16x1xf32>
    %34 = vector.broadcast %33 : vector<16x1xf32> to vector<16x8xf32>
    %35 = arith.subf %26, %34 : vector<16x8xf32>
    %36 = math.exp %35 : vector<16x8xf32>
    %cst_17 = arith.constant dense<0.000000e+00> : vector<16xf32>
    %37 = vector.multi_reduction <add>, %36, %cst_17 [1] : vector<16x8xf32> to vector<16xf32>
    %38 = vector.shape_cast %37 : vector<16xf32> to vector<16x1xf32>
    %39 = tpu.reciprocal %38 {approx = true} : vector<16x1xf32> -> vector<16x1xf32>
    %40 = vector.broadcast %39 : vector<16x1xf32> to vector<16x8xf32>
    %41 = arith.mulf %36, %40 : vector<16x8xf32>
    %cst_18 = arith.constant dense<0xFF800000> : vector<8xf32>
    %42 = vector.multi_reduction <maximumf>, %31, %cst_18 [1] : vector<8x16xf32> to vector<8xf32>
    %43 = vector.shape_cast %42 : vector<8xf32> to vector<8x1xf32>
    %44 = vector.broadcast %43 : vector<8x1xf32> to vector<8x16xf32>
    %45 = arith.subf %31, %44 : vector<8x16xf32>
    %46 = math.exp %45 : vector<8x16xf32>
    %cst_19 = arith.constant dense<0.000000e+00> : vector<8xf32>
    %47 = vector.multi_reduction <add>, %46, %cst_19 [1] : vector<8x16xf32> to vector<8xf32>
    %48 = vector.shape_cast %47 : vector<8xf32> to vector<8x1xf32>
    %49 = tpu.reciprocal %48 {approx = true} : vector<8x1xf32> -> vector<8x1xf32>
    %50 = vector.broadcast %49 : vector<8x1xf32> to vector<8x16xf32>
    %51 = arith.mulf %46, %50 : vector<8x16xf32>
    %cst_20 = arith.constant dense<0.000000e+00> : vector<16x32xf32>
    %52 = tpu.matmul %41, %3, %cst_20 {dimension_numbers = #tpu.dot_dimension_numbers<[1], [1], [0], [0], [0, 0, 1, 0], [], []>} : vector<16x8xf32>, vector<32x8xf32>, vector<16x32xf32> -> vector<16x32xf32>
    %cst_21 = arith.constant dense<0.000000e+00> : vector<8x32xf32>
    %53 = tpu.matmul %51, %1, %cst_21 {dimension_numbers = #tpu.dot_dimension_numbers<[1], [1], [0], [0], [0, 0, 1, 0], [], []>} : vector<8x16xf32>, vector<32x16xf32>, vector<8x32xf32> -> vector<8x32xf32>
    %cst_22 = arith.constant dense<0.000000e+00> : vector<16x32xf32>
    %54 = tpu.matmul %41, %53, %cst_22 {dimension_numbers = #tpu.dot_dimension_numbers<[1], [0], [0], [1], [0, 0, 1, 1], [], []>} : vector<16x8xf32>, vector<8x32xf32>, vector<16x32xf32> -> vector<16x32xf32>
    %55 = arith.mulf %12, %52 : vector<16x32xf32>
    %56 = arith.mulf %12, %54 : vector<16x32xf32>
    %57 = tpu.concatenate %12, %52, %55, %56 in 1 : vector<16x32xf32>, vector<16x32xf32>, vector<16x32xf32>, vector<16x32xf32> -> vector<16x128xf32>
    %c0_23 = arith.constant 0 : index
    %c0_24 = arith.constant 0 : index
    %c0_25 = arith.constant 0 : index
    %58 = vector.load %arg6[%c0_23, %c0_24, %c0_25] : memref<1x16x128xf32, #tpu.memory_space<vmem>>, vector<1x16x128xf32>
    %59 = vector.shape_cast %58 : vector<1x16x128xf32> to vector<16x128xf32>
    %60 = vector.shape_cast %57 : vector<16x128xf32> to vector<1x16x128xf32>
    tpu.vector_store %arg6[%c0_23, %c0_24, %c0_25], %60 {strides = array<i32>} : memref<1x16x128xf32, #tpu.memory_space<vmem>>, vector<1x16x128xf32>,
    return
  }
  func.func @transform_0(%arg0: i32) -> (i32, i32, i32) {
    %c0_i32 = arith.constant 0 : i32
    %c0_i32_0 = arith.constant 0 : i32
    %c0_i32_1 = arith.constant 0 : i32
    return %arg0, %c0_i32, %c0_i32_0 : i32, i32, i32
  }
  func.func @transform_1(%arg0: i32) -> (i32, i32, i32) {
    %c0_i32 = arith.constant 0 : i32
    %c0_i32_0 = arith.constant 0 : i32
    %c0_i32_1 = arith.constant 0 : i32
    return %arg0, %c0_i32, %c0_i32_0 : i32, i32, i32
  }
  func.func @transform_2(%arg0: i32) -> (i32, i32, i32) {
    %c0_i32 = arith.constant 0 : i32
    %c0_i32_0 = arith.constant 0 : i32
    %c0_i32_1 = arith.constant 0 : i32
    return %arg0, %c0_i32, %c0_i32_0 : i32, i32, i32
  }
  func.func @transform_3(%arg0: i32) -> (i32, i32, i32) {
    %c0_i32 = arith.constant 0 : i32
    %c0_i32_0 = arith.constant 0 : i32
    %c0_i32_1 = arith.constant 0 : i32
    return %arg0, %c0_i32, %c0_i32_0 : i32, i32, i32
  }
  func.func @transform_4(%arg0: i32) -> (i32, i32) {
    %c0_i32 = arith.constant 0 : i32
    %c0_i32_0 = arith.constant 0 : i32
    %c0_i32_1 = arith.constant 0 : i32
    return %c0_i32, %c0_i32_0 : i32, i32
  }
  func.func @transform_5(%arg0: i32) -> (i32, i32, i32) {
    %c0_i32 = arith.constant 0 : i32
    %c0_i32_0 = arith.constant 0 : i32
    %c0_i32_1 = arith.constant 0 : i32
    return %arg0, %c0_i32, %c0_i32_0 : i32, i32, i32
  }
}

</mosaic_0001>

<llo_original>
// kernel: tpu_custom_call.1
$region0: #{tpu_custom_call.1}
  #allocation0 [shape = 'u32[]', space=smem, size = 0x4, offset = 0x4, fixed_abs, tag = 'smem constant byte address 0x4 - core index']
  #allocation1 [shape = 'u32[144,128]{1,0:T(1,128)}', space=vmem, size = 0x12000, scoped, tag = 'internal scratch']
  %s0 = inlined_call_operand.vmem [shape: f32[2,32,16], index: 0, kind: input, shape index: {}]
  %s1 = inlined_call_operand.vmem [shape: f32[2,32,8], index: 1, kind: input, shape index: {}]
  %s2 = inlined_call_operand.vmem [shape: f32[2,1,16], index: 2, kind: input, shape index: {}]
  %s3 = inlined_call_operand.vmem [shape: f32[2,1,8], index: 3, kind: input, shape index: {}]
  %s4 = inlined_call_operand.vmem [shape: f32[3,32], index: 4, kind: input, shape index: {}]
  %s5 = inlined_call_operand.hbm [shape: f32[2,16,128], index: 5, kind: output, shape index: {}]
  %s6 = sld [smem:[#allocation0]]
  $region53: #{tpu_custom_call.1} parent=0
    _
  %s8 = ssub.s32 1, %s6
  %s9 = scalar_select 0, %s8, %s6
  $region1: #{tpu_custom_call.1} parent=0
    #allocation2 [shape = 'u8[16384]{0}', space=vmem, size = 0x4000, scoped, tag = 'output window, operand 0']
    #allocation3 [shape = 's32[2]{0}', space=sflag, size = 0x8, scoped, tag = 'scoped memory for tpu_custom_call.1']
    %10 = vsyncpa [#allocation3], 0
    %s11 = scalar_lea.sflag [#allocation3], 1
    %12 = vsyncpa %s11, 0
    loop: start=0, step=1, limit=4
    $region2: #{tpu_custom_call.1} parent=1 // loop_pre_header
      _
    $region3: #{tpu_custom_call.1} parent=1 // loop_header
      %s14 = sphi 0, %s18
      %p15 = scmp.ge.s32.totalorder %s14, 4
      %s24 = sphi 0, %s26
      %s27 = sphi 0, %s24
      %s28 = sphi 0, %s27
      %s44 = sphi 0, %s28
      %s50 = sphi 0, %s52
      %s53 = sphi 0, %s50
      %s54 = sphi 0, %s53
      %s70 = sphi 0, %s54
      %s76 = sphi 0, %s78
      %s79 = sphi 0, %s76
      %s80 = sphi 0, %s79
      %s96 = sphi 0, %s80
      %s102 = sphi 0, %s104
      %s105 = sphi 0, %s102
      %s106 = sphi 0, %s105
      %s122 = sphi 0, %s106
      %s126 = sphi 0, %s126
      %s128 = sphi 0, %s126
      %s129 = sphi 0, %s128
      %s143 = sphi 0, %s129
      %s149 = sphi 0, %s151
      %s152 = sphi 0, %s149
      %s153 = sphi 0, %s152
      %s169 = sphi 0, %s153
    $region4: #{tpu_custom_call.1} parent=1 // loop_header_branch
      %17 = sbr.rel (%p15) target = $region8
    $region5: #{tpu_custom_call.1} parent=1 // loop_body
      %s19 = ssub.s32 %s14, 1
      %s20 = ssub.s32 %s14, 2
      %s21 = sadd.s32 %s14, 1
      %s22 = ssub.s32 %s14, %s21
      %p23 = scmp.eq.s32.totalorder %s22, 0
      %s25 = sadd.s32 %s24, 1
      %s26 = scalar_select %p23, %s24, %s25
      %p29 = pneg %p23
      %p30 = scmp.eq.s32.totalorder %s14, 1
      %p31 = por %p29, %p30
      %p32 = scmp.ne.s32.totalorder %s24, %s27
      %p33 = scmp.eq.s32.totalorder %s14, 0
      %p34 = por %p32, %p33
      %p35 = scmp.ne.s32.totalorder %s24, %s27
      %p36 = scmp.eq.s32.totalorder %s19, 1
      %p37 = por %p35, %p36
      %p38 = scmp.ne.s32.totalorder %s27, %s28
      %p39 = scmp.eq.s32.totalorder %s19, 0
      %p40 = por %p38, %p39
      %p41 = scmp.ne.s32.totalorder %s27, %s28
      %p42 = scmp.eq.s32.totalorder %s20, 1
      %p43 = por %p41, %p42
      %p45 = scmp.ne.s32.totalorder %s28, %s44
      %p46 = scmp.eq.s32.totalorder %s20, 0
      %p47 = por %p45, %p46
      %s48 = ssub.s32 %s14, %s21
      %p49 = scmp.eq.s32.totalorder %s48, 0
      %s51 = sadd.s32 %s50, 1
      %s52 = scalar_select %p49, %s50, %s51
      %p55 = pneg %p49
      %p56 = scmp.eq.s32.totalorder %s14, 1
      %p57 = por %p55, %p56
      %p58 = scmp.ne.s32.totalorder %s50, %s53
      %p59 = scmp.eq.s32.totalorder %s14, 0
      %p60 = por %p58, %p59
      %p61 = scmp.ne.s32.totalorder %s50, %s53
      %p62 = scmp.eq.s32.totalorder %s19, 1
      %p63 = por %p61, %p62
      %p64 = scmp.ne.s32.totalorder %s53, %s54
      %p65 = scmp.eq.s32.totalorder %s19, 0
      %p66 = por %p64, %p65
      %p67 = scmp.ne.s32.totalorder %s53, %s54
      %p68 = scmp.eq.s32.totalorder %s20, 1
      %p69 = por %p67, %p68
      %p71 = scmp.ne.s32.totalorder %s54, %s70
      %p72 = scmp.eq.s32.totalorder %s20, 0
      %p73 = por %p71, %p72
      %s74 = ssub.s32 %s14, %s21
      %p75 = scmp.eq.s32.totalorder %s74, 0
      %s77 = sadd.s32 %s76, 1
      %s78 = scalar_select %p75, %s76, %s77
      %p81 = pneg %p75
      %p82 = scmp.eq.s32.totalorder %s14, 1
      %p83 = por %p81, %p82
      %p84 = scmp.ne.s32.totalorder %s76, %s79
      %p85 = scmp.eq.s32.totalorder %s14, 0
      %p86 = por %p84, %p85
      %p87 = scmp.ne.s32.totalorder %s76, %s79
      %p88 = scmp.eq.s32.totalorder %s19, 1
      %p89 = por %p87, %p88
      %p90 = scmp.ne.s32.totalorder %s79, %s80
      %p91 = scmp.eq.s32.totalorder %s19, 0
      %p92 = por %p90, %p91
      %p93 = scmp.ne.s32.totalorder %s79, %s80
      %p94 = scmp.eq.s32.totalorder %s20, 1
      %p95 = por %p93, %p94
      %p97 = scmp.ne.s32.totalorder %s80, %s96
      %p98 = scmp.eq.s32.totalorder %s20, 0
      %p99 = por %p97, %p98
      %s100 = ssub.s32 %s14, %s21
      %p101 = scmp.eq.s32.totalorder %s100, 0
      %s103 = sadd.s32 %s102, 1
      %s104 = scalar_select %p101, %s102, %s103
      %p107 = pneg %p101
      %p108 = scmp.eq.s32.totalorder %s14, 1
      %p109 = por %p107, %p108
      %p110 = scmp.ne.s32.totalorder %s102, %s105
      %p111 = scmp.eq.s32.totalorder %s14, 0
      %p112 = por %p110, %p111
      %p113 = scmp.ne.s32.totalorder %s102, %s105
      %p114 = scmp.eq.s32.totalorder %s19, 1
      %p115 = por %p113, %p114
      %p116 = scmp.ne.s32.totalorder %s105, %s106
      %p117 = scmp.eq.s32.totalorder %s19, 0
      %p118 = por %p116, %p117
      %p119 = scmp.ne.s32.totalorder %s105, %s106
      %p120 = scmp.eq.s32.totalorder %s20, 1
      %p121 = por %p119, %p120
      %p123 = scmp.ne.s32.totalorder %s106, %s122
      %p124 = scmp.eq.s32.totalorder %s20, 0
      %p125 = por %p123, %p124
      %s127 = sadd.s32 %s126, 1
      %p130 = scmp.eq.s32.totalorder %s14, 1
      %p131 = scmp.ne.s32.totalorder %s126, %s128
      %p132 = scmp.eq.s32.totalorder %s14, 0
      %p133 = por %p131, %p132
      %p134 = scmp.ne.s32.totalorder %s126, %s128
      %p135 = scmp.eq.s32.totalorder %s19, 1
      %p136 = por %p134, %p135
      %p137 = scmp.ne.s32.totalorder %s128, %s129
      %p138 = scmp.eq.s32.totalorder %s19, 0
      %p139 = por %p137, %p138
      %p140 = scmp.ne.s32.totalorder %s128, %s129
      %p141 = scmp.eq.s32.totalorder %s20, 1
      %p142 = por %p140, %p141
      %p144 = scmp.ne.s32.totalorder %s129, %s143
      %p145 = scmp.eq.s32.totalorder %s20, 0
      %p146 = por %p144, %p145
      %s147 = ssub.s32 %s14, %s21
      %p148 = scmp.eq.s32.totalorder %s147, 0
      %s150 = sadd.s32 %s149, 1
      %s151 = scalar_select %p148, %s149, %s150
      %p154 = pneg %p148
      %p155 = scmp.eq.s32.totalorder %s14, 1
      %p156 = por %p154, %p155
      %p157 = scmp.ne.s32.totalorder %s149, %s152
      %p158 = scmp.eq.s32.totalorder %s14, 0
      %p159 = por %p157, %p158
      %p160 = scmp.ne.s32.totalorder %s149, %s152
      %p161 = scmp.eq.s32.totalorder %s19, 1
      %p162 = por %p160, %p161
      %p163 = scmp.ne.s32.totalorder %s152, %s153
      %p164 = scmp.eq.s32.totalorder %s19, 0
      %p165 = por %p163, %p164
      %p166 = scmp.ne.s32.totalorder %s152, %s153
      %p167 = scmp.eq.s32.totalorder %s20, 1
      %p168 = por %p166, %p167
      %p170 = scmp.ne.s32.totalorder %s153, %s169
      %p171 = scmp.eq.s32.totalorder %s20, 0
      %p172 = por %p170, %p171
      %p173 = scmp.le.s32.totalorder 1, %s14
      %p174 = scmp.lt.s32.totalorder %s14, 3
      %p175 = pnand %p173, %p174
      %p176 = pneg %p175
      // Predicated region
      $region9: #{tpu_custom_call.1} parent=5 // pred_check
        _
      $region10: #{tpu_custom_call.1} parent=5 // pred_check_branch
        %178 = sbr.rel (%p175) target = $region12
      $region11: #{tpu_custom_call.1} parent=5 // pred_region
        %s179 = ssub.s32 %s14, 1
        // Predicated region
        $region13: #{tpu_custom_call.1} parent=11 // pred_check
          %p180 = pneg %p139
        $region14: #{tpu_custom_call.1} parent=11 // pred_check_branch
          %182 = sbr.rel (%p180) target = $region16
        $region15: #{tpu_custom_call.1} parent=11 // pred_region
          _
        $region16: #{tpu_custom_call.1} parent=11 // pred_fallthru
          _
      $region12: #{tpu_custom_call.1} parent=5 // pred_fallthru
        _
      %p183 = scmp.lt.s32.totalorder %s14, 2
      // Predicated region
      $region17: #{tpu_custom_call.1} parent=5 // pred_check
        %p184 = pneg %p183
      $region18: #{tpu_custom_call.1} parent=5 // pred_check_branch
        %186 = sbr.rel (%p184) target = $region20
      $region19: #{tpu_custom_call.1} parent=5 // pred_region
        // Predicated region
        $region21: #{tpu_custom_call.1} parent=19 // pred_check
          %p187 = pneg %p34
        $region22: #{tpu_custom_call.1} parent=19 // pred_check_branch
          %189 = sbr.rel (%p187) target = $region24
        $region23: #{tpu_custom_call.1} parent=19 // pred_region
          %p190 = scmp.lt.s32.totalorder %s14, 1
          %s191 = scalar_select %p190, %s14, 1
          %s192 = smul.addr %s191, 4
          %s193 = smul.addr %s192, 8
          %s194 = scalar_lea.vmem %s0, %s193
        $region24: #{tpu_custom_call.1} parent=19 // pred_fallthru
          _
        // Predicated region
        $region25: #{tpu_custom_call.1} parent=19 // pred_check
          %p195 = pneg %p60
        $region26: #{tpu_custom_call.1} parent=19 // pred_check_branch
          %197 = sbr.rel (%p195) target = $region28
        $region27: #{tpu_custom_call.1} parent=19 // pred_region
          %p198 = scmp.lt.s32.totalorder %s14, 1
          %s199 = scalar_select %p198, %s14, 1
          %s200 = smul.addr %s199, 4
          %s201 = smul.addr %s200, 8
          %s202 = scalar_lea.vmem %s1, %s201
        $region28: #{tpu_custom_call.1} parent=19 // pred_fallthru
          _
        // Predicated region
        $region29: #{tpu_custom_call.1} parent=19 // pred_check
          %p203 = pneg %p86
        $region30: #{tpu_custom_call.1} parent=19 // pred_check_branch
          %205 = sbr.rel (%p203) target = $region32
        $region31: #{tpu_custom_call.1} parent=19 // pred_region
          %p206 = scmp.lt.s32.totalorder %s14, 1
          %s207 = scalar_select %p206, %s14, 1
          %s208 = scalar_lea.vmem %s2, %s207
        $region32: #{tpu_custom_call.1} parent=19 // pred_fallthru
          _
        // Predicated region
        $region33: #{tpu_custom_call.1} parent=19 // pred_check
          %p209 = pneg %p112
        $region34: #{tpu_custom_call.1} parent=19 // pred_check_branch
          %211 = sbr.rel (%p209) target = $region36
        $region35: #{tpu_custom_call.1} parent=19 // pred_region
          %p212 = scmp.lt.s32.totalorder %s14, 1
          %s213 = scalar_select %p212, %s14, 1
          %s214 = scalar_lea.vmem %s3, %s213
        $region36: #{tpu_custom_call.1} parent=19 // pred_fallthru
          _
      $region20: #{tpu_custom_call.1} parent=5 // pred_fallthru
        _
      %p215 = scmp.le.s32.totalorder 1, %s14
      %p216 = scmp.lt.s32.totalorder %s14, 3
      %p217 = pnand %p215, %p216
      %p218 = pneg %p217
      // Predicated region
      $region37: #{tpu_custom_call.1} parent=5 // pred_check
        _
      $region38: #{tpu_custom_call.1} parent=5 // pred_check_branch
        %220 = sbr.rel (%p217) target = $region40
      $region39: #{tpu_custom_call.1} parent=5 // pred_region
        %s221 = ssub.s32 %s14, 1
        %p222 = scmp.lt.s32.totalorder %s19, 1
        %s223 = scalar_select %p222, %s19, 1
        %s224 = smul.addr %s223, 4
        %s225 = smul.addr %s224, 8
        %s226 = scalar_lea.vmem %s0, %s225
        %p227 = pneg %p40
        %p228 = pneg %p37
        %p229 = scmp.lt.s32.totalorder %s19, 1
        %s230 = scalar_select %p229, %s19, 1
        %s231 = smul.addr %s230, 4
        %s232 = smul.addr %s231, 8
        %s233 = scalar_lea.vmem %s1, %s232
        %p234 = pneg %p66
        %p235 = pneg %p63
        %p236 = scmp.lt.s32.totalorder %s19, 1
        %s237 = scalar_select %p236, %s19, 1
        %s238 = scalar_lea.vmem %s2, %s237
        %p239 = pneg %p92
        %p240 = pneg %p89
        %p241 = scmp.lt.s32.totalorder %s19, 1
        %s242 = scalar_select %p241, %s19, 1
        %s243 = scalar_lea.vmem %s3, %s242
        %p244 = pneg %p118
        %p245 = pneg %p115
        %p246 = pneg %p139
        %p247 = pneg %p136
        %p248 = pneg %p165
        %p249 = pneg %p162
        %s250 = sand.u32 %s152, 1
        %s251 = scalar_lea.sflag [#allocation3], %s250
        %s252 = sand.u32 %s152, 1
        %s253 = smul.addr %s252, 16
        %s254 = scalar_lea.vmem [#allocation2], %s253
        %p255 = scmp.lt.s32.totalorder %s19, 1
        %s256 = scalar_select %p255, %s19, 1
        %s257 = smul.addr %s256, 4
        %s258 = smul.addr %s257, 8
        %s259 = scalar_lea.vmem %s0, %s258
        %p260 = scmp.lt.s32.totalorder %s19, 1
        %s261 = scalar_select %p260, %s19, 1
        %s262 = smul.addr %s261, 4
        %s263 = smul.addr %s262, 8
        %s264 = scalar_lea.vmem %s1, %s263
        %p265 = scmp.lt.s32.totalorder %s19, 1
        %s266 = scalar_select %p265, %s19, 1
        %s267 = scalar_lea.vmem %s2, %s266
        %p268 = scmp.lt.s32.totalorder %s19, 1
        %s269 = scalar_select %p268, %s19, 1
        %s270 = scalar_lea.vmem %s3, %s269
        %v271 = vld [vmem:[%s259] sm:$0xff]
        %v272 = vld [vmem:[%s259 + $0x8] sm:$0xff]
        %v273 = vld [vmem:[%s259 + $0x10] sm:$0xff]
        %v274 = vld [vmem:[%s259 + $0x18] sm:$0xff]
        %v275 = vld [vmem:[%s264] sm:$0xff]
        %v276 = vld [vmem:[%s264 + $0x8] sm:$0xff]
        %v277 = vld [vmem:[%s264 + $0x10] sm:$0xff]
        %v278 = vld [vmem:[%s264 + $0x18] sm:$0xff]
        %v279 = vld [vmem:[%s267] sm:$0x1]
        %v280 = vld [vmem:[%s270] sm:$0x1]
        %v281 = vld [vmem:[%s4] sm:$0x7]
        %282 = vxpose.xlu0.b32.start [1/16] %v271, 128
        %283 = vxpose.xlu0.b32.cont [2/16] %v272, 128
        %284 = vxpose.xlu0.b32.cont [3/16] %v273, 128
        %285 = vxpose.xlu0.b32.cont [4/16] %v274, 128
        %286 = vxpose.xlu0.b32.cont [5/16] 0.0, 128
        %287 = vxpose.xlu0.b32.cont [6/16] 0.0, 128
        %288 = vxpose.xlu0.b32.cont [7/16] 0.0, 128
        %289 = vxpose.xlu0.b32.cont [8/16] 0.0, 128
        %290 = vxpose.xlu0.b32.cont [9/16] 0.0, 128
        %291 = vxpose.xlu0.b32.cont [10/16] 0.0, 128
        %292 = vxpose.xlu0.b32.cont [11/16] 0.0, 128
        %293 = vxpose.xlu0.b32.cont [12/16] 0.0, 128
        %294 = vxpose.xlu0.b32.cont [13/16] 0.0, 128
        %295 = vxpose.xlu0.b32.cont [14/16] 0.0, 128
        %296 = vxpose.xlu0.b32.cont [15/16] 0.0, 128
        %297 = vxpose.xlu0.b32.end [16/16] 0.0, 128
        %v298 = vpop.trf.xlu0
        %v299 = vpop.trf.xlu0
        %v300 = vpop.trf.xlu0
        %v301 = vpop.trf.xlu0
        %v302 = vpop.trf.xlu0
        %v303 = vpop.trf.xlu0
        %v304 = vpop.trf.xlu0
        %v305 = vpop.trf.xlu0
        %v306 = vpop.trf.xlu0
        %v307 = vpop.trf.xlu0
        %v308 = vpop.trf.xlu0
        %v309 = vpop.trf.xlu0
        %v310 = vpop.trf.xlu0
        %v311 = vpop.trf.xlu0
        %v312 = vpop.trf.xlu0
        %v313 = vpop.trf.xlu0
        %v314 = vlaneseq
        %v315 = vshrl.u32 %v314, 7
        %v316 = vsub.s32 2, %v315
        %v317 = vrot.slane %v281, %v316
        %v318 = vmul.f32 %v298, %v317
        %v319 = vmul.f32 %v299, %v317
        %v320 = vlaneseq
        %v321 = vshrl.u32 %v320, 7
        %v322 = vsub.s32 1, %v321
        %v323 = vrot.slane %v281, %v322
        %v324 = vadd.f32 %v318, %v323
        %v325 = vadd.f32 %v319, %v323
        %v326 = vlaneseq
        %v327 = vshrl.u32 %v326, 7
        %v328 = vsub.s32 0, %v327
        %v329 = vrot.slane %v281, %v328
        %v330 = vmul.f32 %v298, %v329
        %v331 = vmul.f32 %v299, %v329
        %vm332 = vcmask 261120
        %v333 = vsel %vm332, %v330, 0.0
        %334 = vadd.xlane.f32.xlu0 %v333
        %v335 = vpop.xlane.xlu0 %334
        %v336 = vsel %vm332, %v331, 0.0
        %337 = vadd.xlane.f32.xlu0 %v336
        %v338 = vpop.xlane.xlu0 %337
        %v340 = vsel %vm332, %v281, 0
        %342 = vmatprep.subr.mxu0 0.0
        %343 = vmatpush1.msra.mxu0 0.0
        %344 = vmatprep.subr.mxu0 0.0
        %345 = vmatpush1.msra.mxu0 0.0
        %346 = vmatprep.subr.mxu0 0.0
        %347 = vmatpush1.msra.mxu0 0.0
        %348 = vmatprep.subr.mxu0 0.0
        %349 = vmatpush1.msra.mxu0 0.0
        %350 = vmatprep.subr.mxu0 0.0
        %351 = vmatpush1.msra.mxu0 0.0
        %352 = vmatprep.subr.mxu0 0.0
        %353 = vmatpush1.msra.mxu0 0.0
        %354 = vmatprep.subr.mxu0 0.0
        %355 = vmatpush1.msra.mxu0 0.0
        %356 = vmatprep.subr.mxu0 0.0
        %357 = vmatpush1.msra.mxu0 0.0
        %358 = vmatprep.subr.mxu0 0.0
        %359 = vmatpush1.msra.mxu0 0.0
        %360 = vmatprep.subr.mxu0 0.0
        %361 = vmatpush1.msra.mxu0 0.0
        %362 = vmatprep.subr.mxu0 0.0
        %363 = vmatpush1.msra.mxu0 0.0
        %364 = vmatprep.subr.mxu0 0.0
        %365 = vmatpush1.msra.mxu0 0.0
        %366 = vmatprep.subr.mxu0 0.0
        %367 = vmatpush1.msra.mxu0 %v274
        %368 = vmatprep.subr.mxu0 0.0
        %369 = vmatpush1.msra.mxu0 %v273
        %370 = vmatprep.subr.mxu0 0.0
        %371 = vmatpush1.msra.mxu0 %v272
        %372 = vmatprep.subr.mxu0 0.0
        %373 = vmatpush1.msra.mxu0 %v271
        %374 = vmatprep.subr.mxu0 0.0
        %375 = vmatpush2.msra.mxu0 0.0
        %376 = vmatprep.subr.mxu0 0.0
        %377 = vmatpush2.msra.mxu0 0.0
        %378 = vmatprep.subr.mxu0 0.0
        %379 = vmatpush2.msra.mxu0 0.0
        %380 = vmatprep.subr.mxu0 0.0
        %381 = vmatpush2.msra.mxu0 0.0
        %382 = vmatprep.subr.mxu0 0.0
        %383 = vmatpush2.msra.mxu0 0.0
        %384 = vmatprep.subr.mxu0 0.0
        %385 = vmatpush2.msra.mxu0 0.0
        %386 = vmatprep.subr.mxu0 0.0
        %387 = vmatpush2.msra.mxu0 0.0
        %388 = vmatprep.subr.mxu0 0.0
        %389 = vmatpush2.msra.mxu0 0.0
        %390 = vmatprep.subr.mxu0 0.0
        %391 = vmatpush2.msra.mxu0 0.0
        %392 = vmatprep.subr.mxu0 0.0
        %393 = vmatpush2.msra.mxu0 0.0
        %394 = vmatprep.subr.mxu0 0.0
        %395 = vmatpush2.msra.mxu0 0.0
        %396 = vmatprep.subr.mxu0 0.0
        %397 = vmatpush2.msra.mxu0 0.0
        %398 = vmatprep.subr.mxu0 0.0
        %399 = vmatpush2.msra.mxu0 0.0
        %400 = vmatprep.subr.mxu0 0.0
        %401 = vmatpush2.msra.mxu0 0.0
        %402 = vmatprep.subr.mxu0 0.0
        %403 = vmatpush2.msra.mxu0 0.0
        %404 = vmatprep.subr.mxu0 0.0
        %405 = vmatpush2.msra.mxu0 0.0
        %406 = vmatprep.mubr.f32.mxu0 0.0
        %407 = vmatmul.mubr.f32.gmra.mxu0 %v340
        %v408 = vpop.f32.mrf.mxu0
        %v409 = vadd.f32 0.0, %v408
        %v410 = vpop.f32.mrf.mxu0
        %411 = vdwg.mxu0
        %v413 = vsel %vm332, %v324, 0
        %v416 = vsel %vm332, %v325, 0
        %418 = vmatprep.subr.mxu0 0.0
        %419 = vmatpush1.msra.mxu0 0.0
        %420 = vmatprep.subr.mxu0 0.0
        %421 = vmatpush1.msra.mxu0 0.0
        %422 = vmatprep.subr.mxu0 0.0
        %423 = vmatpush1.msra.mxu0 0.0
        %424 = vmatprep.subr.mxu0 0.0
        %425 = vmatpush1.msra.mxu0 0.0
        %426 = vmatprep.subr.mxu0 0.0
        %427 = vmatpush1.msra.mxu0 0.0
        %428 = vmatprep.subr.mxu0 0.0
        %429 = vmatpush1.msra.mxu0 0.0
        %430 = vmatprep.subr.mxu0 0.0
        %431 = vmatpush1.msra.mxu0 0.0
        %432 = vmatprep.subr.mxu0 0.0
        %433 = vmatpush1.msra.mxu0 0.0
        %434 = vmatprep.subr.mxu0 0.0
        %435 = vmatpush1.msra.mxu0 0.0
        %436 = vmatprep.subr.mxu0 0.0
        %437 = vmatpush1.msra.mxu0 0.0
        %438 = vmatprep.subr.mxu0 0.0
        %439 = vmatpush1.msra.mxu0 0.0
        %440 = vmatprep.subr.mxu0 0.0
        %441 = vmatpush1.msra.mxu0 0.0
        %442 = vmatprep.subr.mxu0 0.0
        %443 = vmatpush1.msra.mxu0 %v278
        %444 = vmatprep.subr.mxu0 0.0
        %445 = vmatpush1.msra.mxu0 %v277
        %446 = vmatprep.subr.mxu0 0.0
        %447 = vmatpush1.msra.mxu0 %v276
        %448 = vmatprep.subr.mxu0 0.0
        %449 = vmatpush1.msra.mxu0 %v275
        %450 = vmatprep.subr.mxu0 0.0
        %451 = vmatpush2.msra.mxu0 0.0
        %452 = vmatprep.subr.mxu0 0.0
        %453 = vmatpush2.msra.mxu0 0.0
        %454 = vmatprep.subr.mxu0 0.0
        %455 = vmatpush2.msra.mxu0 0.0
        %456 = vmatprep.subr.mxu0 0.0
        %457 = vmatpush2.msra.mxu0 0.0
        %458 = vmatprep.subr.mxu0 0.0
        %459 = vmatpush2.msra.mxu0 0.0
        %460 = vmatprep.subr.mxu0 0.0
        %461 = vmatpush2.msra.mxu0 0.0
        %462 = vmatprep.subr.mxu0 0.0
        %463 = vmatpush2.msra.mxu0 0.0
        %464 = vmatprep.subr.mxu0 0.0
        %465 = vmatpush2.msra.mxu0 0.0
        %466 = vmatprep.subr.mxu0 0.0
        %467 = vmatpush2.msra.mxu0 0.0
        %468 = vmatprep.subr.mxu0 0.0
        %469 = vmatpush2.msra.mxu0 0.0
        %470 = vmatprep.subr.mxu0 0.0
        %471 = vmatpush2.msra.mxu0 0.0
        %472 = vmatprep.subr.mxu0 0.0
        %473 = vmatpush2.msra.mxu0 0.0
        %474 = vmatprep.subr.mxu0 0.0
        %475 = vmatpush2.msra.mxu0 0.0
        %476 = vmatprep.subr.mxu0 0.0
        %477 = vmatpush2.msra.mxu0 0.0
        %478 = vmatprep.subr.mxu0 0.0
        %479 = vmatpush2.msra.mxu0 0.0
        %480 = vmatprep.subr.mxu0 0.0
        %481 = vmatpush2.msra.mxu0 0.0
        %482 = vmatprep.mubr.f32.mxu0 0.0
        %483 = vmatmul.mubr.f32.gmra.mxu0 %v413
        %v484 = vpop.f32.mrf.mxu0
        %v485 = vadd.f32 %v335, %v484
        %v486 = vpop.f32.mrf.mxu0
        %487 = vmatprep.mubr.f32.mxu0 0.0
        %488 = vmatmul.mubr.f32.gmra.mxu0 %v416
        %v489 = vpop.f32.mrf.mxu0
        %v490 = vadd.f32 %v338, %v489
        %v491 = vpop.f32.mrf.mxu0
        %492 = vdwg.mxu0
        %v494 = vlaneseq
        %v495 = vshrl.u32 %v494, 7
        %v496 = vsub.s32 0, %v495
        %v497 = vrot.slane %v280, %v496
        %v499 = vadd.f32 %v485, %v497
        %v500 = vadd.f32 %v490, %v497
        %v501 = vlaneseq
        %v502 = vshrl.u32 %v501, 7
        %v503 = vsub.s32 0, %v502
        %v504 = vrot.slane %v409, %v503
        %505 = vxpose.xlu0.b32.start [1/16] %v275, 128
        %506 = vxpose.xlu0.b32.cont [2/16] %v276, 128
        %507 = vxpose.xlu0.b32.cont [3/16] %v277, 128
        %508 = vxpose.xlu0.b32.cont [4/16] %v278, 128
        %509 = vxpose.xlu0.b32.cont [5/16] 0.0, 128
        %510 = vxpose.xlu0.b32.cont [6/16] 0.0, 128
        %511 = vxpose.xlu0.b32.cont [7/16] 0.0, 128
        %512 = vxpose.xlu0.b32.cont [8/16] 0.0, 128
        %513 = vxpose.xlu0.b32.cont [9/16] 0.0, 128
        %514 = vxpose.xlu0.b32.cont [10/16] 0.0, 128
        %515 = vxpose.xlu0.b32.cont [11/16] 0.0, 128
        %516 = vxpose.xlu0.b32.cont [12/16] 0.0, 128
        %517 = vxpose.xlu0.b32.cont [13/16] 0.0, 128
        %518 = vxpose.xlu0.b32.cont [14/16] 0.0, 128
        %519 = vxpose.xlu0.b32.cont [15/16] 0.0, 128
        %520 = vxpose.xlu0.b32.end [16/16] 0.0, 128
        %v521 = vpop.trf.xlu0
        %v522 = vpop.trf.xlu0
        %v523 = vpop.trf.xlu0
        %v524 = vpop.trf.xlu0
        %v525 = vpop.trf.xlu0
        %v526 = vpop.trf.xlu0
        %v527 = vpop.trf.xlu0
        %v528 = vpop.trf.xlu0
        %v529 = vpop.trf.xlu0
        %v530 = vpop.trf.xlu0
        %v531 = vpop.trf.xlu0
        %v532 = vpop.trf.xlu0
        %v533 = vpop.trf.xlu0
        %v534 = vpop.trf.xlu0
        %v535 = vpop.trf.xlu0
        %v536 = vpop.trf.xlu0
        %v538 = vsel %vm332, %v521, 0
        %540 = vmatprep.subr.mxu0 0.0
        %541 = vmatpush1.xpose.msra.mxu0 0.0
        %542 = vmatprep.subr.mxu0 0.0
        %543 = vmatpush1.xpose.msra.mxu0 0.0
        %544 = vmatprep.subr.mxu0 0.0
        %545 = vmatpush1.xpose.msra.mxu0 0.0
        %546 = vmatprep.subr.mxu0 0.0
        %547 = vmatpush1.xpose.msra.mxu0 0.0
        %548 = vmatprep.subr.mxu0 0.0
        %549 = vmatpush1.xpose.msra.mxu0 0.0
        %550 = vmatprep.subr.mxu0 0.0
        %551 = vmatpush1.xpose.msra.mxu0 0.0
        %552 = vmatprep.subr.mxu0 0.0
        %553 = vmatpush1.xpose.msra.mxu0 0.0
        %554 = vmatprep.subr.mxu0 0.0
        %555 = vmatpush1.xpose.msra.mxu0 0.0
        %556 = vmatprep.subr.mxu0 0.0
        %557 = vmatpush1.xpose.msra.mxu0 0.0
        %558 = vmatprep.subr.mxu0 0.0
        %559 = vmatpush1.xpose.msra.mxu0 0.0
        %560 = vmatprep.subr.mxu0 0.0
        %561 = vmatpush1.xpose.msra.mxu0 0.0
        %562 = vmatprep.subr.mxu0 0.0
        %563 = vmatpush1.xpose.msra.mxu0 0.0
        %564 = vmatprep.subr.mxu0 0.0
        %565 = vmatpush1.xpose.msra.mxu0 0.0
        %566 = vmatprep.subr.mxu0 0.0
        %567 = vmatpush1.xpose.msra.mxu0 0.0
        %568 = vmatprep.subr.mxu0 0.0
        %569 = vmatpush1.xpose.msra.mxu0 %v416
        %570 = vmatprep.subr.mxu0 0.0
        %571 = vmatpush1.xpose.msra.mxu0 %v413
        %572 = vmatprep.subr.mxu0 0.0
        %573 = vmatpush2.xpose.msra.mxu0 0.0
        %574 = vmatprep.subr.mxu0 0.0
        %575 = vmatpush2.xpose.msra.mxu0 0.0
        %576 = vmatprep.subr.mxu0 0.0
        %577 = vmatpush2.xpose.msra.mxu0 0.0
        %578 = vmatprep.subr.mxu0 0.0
        %579 = vmatpush2.xpose.msra.mxu0 0.0
        %580 = vmatprep.subr.mxu0 0.0
        %581 = vmatpush2.xpose.msra.mxu0 0.0
        %582 = vmatprep.subr.mxu0 0.0
        %583 = vmatpush2.xpose.msra.mxu0 0.0
        %584 = vmatprep.subr.mxu0 0.0
        %585 = vmatpush2.xpose.msra.mxu0 0.0
        %586 = vmatprep.subr.mxu0 0.0
        %587 = vmatpush2.xpose.msra.mxu0 0.0
        %588 = vmatprep.subr.mxu0 0.0
        %589 = vmatpush2.xpose.msra.mxu0 0.0
        %590 = vmatprep.subr.mxu0 0.0
        %591 = vmatpush2.xpose.msra.mxu0 0.0
        %592 = vmatprep.subr.mxu0 0.0
        %593 = vmatpush2.xpose.msra.mxu0 0.0
        %594 = vmatprep.subr.mxu0 0.0
        %595 = vmatpush2.xpose.msra.mxu0 0.0
        %596 = vmatprep.subr.mxu0 0.0
        %597 = vmatpush2.xpose.msra.mxu0 0.0
        %598 = vmatprep.subr.mxu0 0.0
        %599 = vmatpush2.xpose.msra.mxu0 0.0
        %600 = vmatprep.subr.mxu0 0.0
        %601 = vmatpush2.xpose.msra.mxu0 0.0
        %602 = vmatprep.subr.mxu0 0.0
        %603 = vmatpush2.xpose.msra.mxu0 0.0
        %604 = vmatprep.mubr.f32.mxu0 0.0
        %605 = vmatmul.mubr.f32.gmra.mxu0 %v538
        %v606 = vpop.f32.mrf.mxu0
        %v607 = vadd.f32 %v504, %v606
        %v608 = vpop.f32.mrf.mxu0
        %609 = vdwg.mxu0
        %v611 = vlaneseq
        %v612 = vshrl.u32 %v611, 7
        %v613 = vsub.s32 0, %v612
        %v614 = vrot.slane %v279, %v613
        %v616 = vadd.f32 %v607, %v614
        %vm617 = vcmask 64512
        %v618 = vsel %vm617, %v499, -inf
        %619 = vmax.xlane.f32.xlu0 %v618
        %v620 = vpop.xlane.xlu0 %619
        %v621 = vsel %vm617, %v500, -inf
        %622 = vmax.xlane.f32.xlu0 %v621
        %v623 = vpop.xlane.xlu0 %622
        %v624 = vsub.f32 %v499, %v620
        %v625 = vsub.f32 %v500, %v623
        %v626 = vmul.f32 %v624, 1.442695
        %v627 = vpow.pop %v626
        %v628 = vmul.f32 %v625, 1.442695
        %v629 = vpow.pop %v628
        %v630 = vsel %vm617, %v627, 0.0
        %631 = vadd.xlane.f32.xlu0 %v630
        %v632 = vpop.xlane.xlu0 %631
        %v633 = vsel %vm617, %v629, 0.0
        %634 = vadd.xlane.f32.xlu0 %v633
        %v635 = vpop.xlane.xlu0 %634
        %v636 = vrcp.pop %v632
        %v637 = vrcp.pop %v635
        %v638 = vmul.f32 %v627, %v636
        %v639 = vmul.f32 %v629, %v637
        %vm640 = vcmask 130048
        %v641 = vsel %vm640, %v616, -inf
        %642 = vmax.xlane.f32.xlu0 %v641
        %v643 = vpop.xlane.xlu0 %642
        %v644 = vsub.f32 %v616, %v643
        %v645 = vmul.f32 %v644, 1.442695
        %v646 = vpow.pop %v645
        %v647 = vsel %vm640, %v646, 0.0
        %648 = vadd.xlane.f32.xlu0 %v647
        %v649 = vpop.xlane.xlu0 %648
        %v650 = vrcp.pop %v649
        %v651 = vmul.f32 %v646, %v650
        %v653 = vsel %vm617, %v638, 0
        %v656 = vsel %vm617, %v639, 0
        %v659 = vsel %vm617, %v275, 0
        %v662 = vsel %vm617, %v276, 0
        %v665 = vsel %vm617, %v277, 0
        %v668 = vsel %vm617, %v278, 0
        %670 = vmatprep.subr.mxu0 0.0
        %671 = vmatpush1.xpose.msra.mxu0 0.0
        %672 = vmatprep.subr.mxu0 0.0
        %673 = vmatpush1.xpose.msra.mxu0 0.0
        %674 = vmatprep.subr.mxu0 0.0
        %675 = vmatpush1.xpose.msra.mxu0 0.0
        %676 = vmatprep.subr.mxu0 0.0
        %677 = vmatpush1.xpose.msra.mxu0 0.0
        %678 = vmatprep.subr.mxu0 0.0
        %679 = vmatpush1.xpose.msra.mxu0 0.0
        %680 = vmatprep.subr.mxu0 0.0
        %681 = vmatpush1.xpose.msra.mxu0 0.0
        %682 = vmatprep.subr.mxu0 0.0
        %683 = vmatpush1.xpose.msra.mxu0 0.0
        %684 = vmatprep.subr.mxu0 0.0
        %685 = vmatpush1.xpose.msra.mxu0 0.0
        %686 = vmatprep.subr.mxu0 0.0
        %687 = vmatpush1.xpose.msra.mxu0 0.0
        %688 = vmatprep.subr.mxu0 0.0
        %689 = vmatpush1.xpose.msra.mxu0 0.0
        %690 = vmatprep.subr.mxu0 0.0
        %691 = vmatpush1.xpose.msra.mxu0 0.0
        %692 = vmatprep.subr.mxu0 0.0
        %693 = vmatpush1.xpose.msra.mxu0 0.0
        %694 = vmatprep.subr.mxu0 0.0
        %695 = vmatpush1.xpose.msra.mxu0 %v668
        %696 = vmatprep.subr.mxu0 0.0
        %697 = vmatpush1.xpose.msra.mxu0 %v665
        %698 = vmatprep.subr.mxu0 0.0
        %699 = vmatpush1.xpose.msra.mxu0 %v662
        %700 = vmatprep.subr.mxu0 0.0
        %701 = vmatpush1.xpose.msra.mxu0 %v659
        %702 = vmatprep.subr.mxu0 0.0
        %703 = vmatpush2.xpose.msra.mxu0 0.0
        %704 = vmatprep.subr.mxu0 0.0
        %705 = vmatpush2.xpose.msra.mxu0 0.0
        %706 = vmatprep.subr.mxu0 0.0
        %707 = vmatpush2.xpose.msra.mxu0 0.0
        %708 = vmatprep.subr.mxu0 0.0
        %709 = vmatpush2.xpose.msra.mxu0 0.0
        %710 = vmatprep.subr.mxu0 0.0
        %711 = vmatpush2.xpose.msra.mxu0 0.0
        %712 = vmatprep.subr.mxu0 0.0
        %713 = vmatpush2.xpose.msra.mxu0 0.0
        %714 = vmatprep.subr.mxu0 0.0
        %715 = vmatpush2.xpose.msra.mxu0 0.0
        %716 = vmatprep.subr.mxu0 0.0
        %717 = vmatpush2.xpose.msra.mxu0 0.0
        %718 = vmatprep.subr.mxu0 0.0
        %719 = vmatpush2.xpose.msra.mxu0 0.0
        %720 = vmatprep.subr.mxu0 0.0
        %721 = vmatpush2.xpose.msra.mxu0 0.0
        %722 = vmatprep.subr.mxu0 0.0
        %723 = vmatpush2.xpose.msra.mxu0 0.0
        %724 = vmatprep.subr.mxu0 0.0
        %725 = vmatpush2.xpose.msra.mxu0 0.0
        %726 = vmatprep.subr.mxu0 0.0
        %727 = vmatpush2.xpose.msra.mxu0 0.0
        %728 = vmatprep.subr.mxu0 0.0
        %729 = vmatpush2.xpose.msra.mxu0 0.0
        %730 = vmatprep.subr.mxu0 0.0
        %731 = vmatpush2.xpose.msra.mxu0 0.0
        %732 = vmatprep.subr.mxu0 0.0
        %733 = vmatpush2.xpose.msra.mxu0 0.0
        %734 = vmatprep.mubr.f32.mxu0 0.0
        %735 = vmatmul.mubr.f32.gmra.mxu0 %v653
        %v736 = vpop.f32.mrf.mxu0
        %v737 = vadd.f32 0.0, %v736
        %v738 = vpop.f32.mrf.mxu0
        %739 = vmatprep.mubr.f32.mxu0 0.0
        %740 = vmatmul.mubr.f32.gmra.mxu0 %v656
        %v741 = vpop.f32.mrf.mxu0
        %v742 = vadd.f32 0.0, %v741
        %v743 = vpop.f32.mrf.mxu0
        %744 = vdwg.mxu0
        %v746 = vsel %vm640, %v651, 0
        %v749 = vsel %vm640, %v271, 0
        %v752 = vsel %vm640, %v272, 0
        %v755 = vsel %vm640, %v273, 0
        %v758 = vsel %vm640, %v274, 0
        %760 = vmatprep.subr.mxu0 0.0
        %761 = vmatpush1.xpose.msra.mxu0 0.0
        %762 = vmatprep.subr.mxu0 0.0
        %763 = vmatpush1.xpose.msra.mxu0 0.0
        %764 = vmatprep.subr.mxu0 0.0
        %765 = vmatpush1.xpose.msra.mxu0 0.0
        %766 = vmatprep.subr.mxu0 0.0
        %767 = vmatpush1.xpose.msra.mxu0 0.0
        %768 = vmatprep.subr.mxu0 0.0
        %769 = vmatpush1.xpose.msra.mxu0 0.0
        %770 = vmatprep.subr.mxu0 0.0
        %771 = vmatpush1.xpose.msra.mxu0 0.0
        %772 = vmatprep.subr.mxu0 0.0
        %773 = vmatpush1.xpose.msra.mxu0 0.0
        %774 = vmatprep.subr.mxu0 0.0
        %775 = vmatpush1.xpose.msra.mxu0 0.0
        %776 = vmatprep.subr.mxu0 0.0
        %777 = vmatpush1.xpose.msra.mxu0 0.0
        %778 = vmatprep.subr.mxu0 0.0
        %779 = vmatpush1.xpose.msra.mxu0 0.0
        %780 = vmatprep.subr.mxu0 0.0
        %781 = vmatpush1.xpose.msra.mxu0 0.0
        %782 = vmatprep.subr.mxu0 0.0
        %783 = vmatpush1.xpose.msra.mxu0 0.0
        %784 = vmatprep.subr.mxu0 0.0
        %785 = vmatpush1.xpose.msra.mxu0 %v758
        %786 = vmatprep.subr.mxu0 0.0
        %787 = vmatpush1.xpose.msra.mxu0 %v755
        %788 = vmatprep.subr.mxu0 0.0
        %789 = vmatpush1.xpose.msra.mxu0 %v752
        %790 = vmatprep.subr.mxu0 0.0
        %791 = vmatpush1.xpose.msra.mxu0 %v749
        %792 = vmatprep.subr.mxu0 0.0
        %793 = vmatpush2.xpose.msra.mxu0 0.0
        %794 = vmatprep.subr.mxu0 0.0
        %795 = vmatpush2.xpose.msra.mxu0 0.0
        %796 = vmatprep.subr.mxu0 0.0
        %797 = vmatpush2.xpose.msra.mxu0 0.0
        %798 = vmatprep.subr.mxu0 0.0
        %799 = vmatpush2.xpose.msra.mxu0 0.0
        %800 = vmatprep.subr.mxu0 0.0
        %801 = vmatpush2.xpose.msra.mxu0 0.0
        %802 = vmatprep.subr.mxu0 0.0
        %803 = vmatpush2.xpose.msra.mxu0 0.0
        %804 = vmatprep.subr.mxu0 0.0
        %805 = vmatpush2.xpose.msra.mxu0 0.0
        %806 = vmatprep.subr.mxu0 0.0
        %807 = vmatpush2.xpose.msra.mxu0 0.0
        %808 = vmatprep.subr.mxu0 0.0
        %809 = vmatpush2.xpose.msra.mxu0 0.0
        %810 = vmatprep.subr.mxu0 0.0
        %811 = vmatpush2.xpose.msra.mxu0 0.0
        %812 = vmatprep.subr.mxu0 0.0
        %813 = vmatpush2.xpose.msra.mxu0 0.0
        %814 = vmatprep.subr.mxu0 0.0
        %815 = vmatpush2.xpose.msra.mxu0 0.0
        %816 = vmatprep.subr.mxu0 0.0
        %817 = vmatpush2.xpose.msra.mxu0 0.0
        %818 = vmatprep.subr.mxu0 0.0
        %819 = vmatpush2.xpose.msra.mxu0 0.0
        %820 = vmatprep.subr.mxu0 0.0
        %821 = vmatpush2.xpose.msra.mxu0 0.0
        %822 = vmatprep.subr.mxu0 0.0
        %823 = vmatpush2.xpose.msra.mxu0 0.0
        %824 = vmatprep.mubr.f32.mxu0 0.0
        %825 = vmatmul.mubr.f32.gmra.mxu0 %v746
        %v826 = vpop.f32.mrf.mxu0
        %v827 = vadd.f32 0.0, %v826
        %v828 = vpop.f32.mrf.mxu0
        %829 = vdwg.mxu0
        %830 = vmatprep.subr.mxu0 0.0
        %831 = vmatpush1.msra.mxu0 0.0
        %832 = vmatprep.subr.mxu0 0.0
        %833 = vmatpush1.msra.mxu0 0.0
        %834 = vmatprep.subr.mxu0 0.0
        %835 = vmatpush1.msra.mxu0 0.0
        %836 = vmatprep.subr.mxu0 0.0
        %837 = vmatpush1.msra.mxu0 0.0
        %838 = vmatprep.subr.mxu0 0.0
        %839 = vmatpush1.msra.mxu0 0.0
        %840 = vmatprep.subr.mxu0 0.0
        %841 = vmatpush1.msra.mxu0 0.0
        %842 = vmatprep.subr.mxu0 0.0
        %843 = vmatpush1.msra.mxu0 0.0
        %844 = vmatprep.subr.mxu0 0.0
        %845 = vmatpush1.msra.mxu0 0.0
        %846 = vmatprep.subr.mxu0 0.0
        %847 = vmatpush1.msra.mxu0 0.0
        %848 = vmatprep.subr.mxu0 0.0
        %849 = vmatpush1.msra.mxu0 0.0
        %850 = vmatprep.subr.mxu0 0.0
        %851 = vmatpush1.msra.mxu0 0.0
        %852 = vmatprep.subr.mxu0 0.0
        %853 = vmatpush1.msra.mxu0 0.0
        %854 = vmatprep.subr.mxu0 0.0
        %855 = vmatpush1.msra.mxu0 0.0
        %856 = vmatprep.subr.mxu0 0.0
        %857 = vmatpush1.msra.mxu0 0.0
        %858 = vmatprep.subr.mxu0 0.0
        %859 = vmatpush1.msra.mxu0 0.0
        %860 = vmatprep.subr.mxu0 0.0
        %861 = vmatpush1.msra.mxu0 %v827
        %862 = vmatprep.subr.mxu0 0.0
        %863 = vmatpush2.msra.mxu0 0.0
        %864 = vmatprep.subr.mxu0 0.0
        %865 = vmatpush2.msra.mxu0 0.0
        %866 = vmatprep.subr.mxu0 0.0
        %867 = vmatpush2.msra.mxu0 0.0
        %868 = vmatprep.subr.mxu0 0.0
        %869 = vmatpush2.msra.mxu0 0.0
        %870 = vmatprep.subr.mxu0 0.0
        %871 = vmatpush2.msra.mxu0 0.0
        %872 = vmatprep.subr.mxu0 0.0
        %873 = vmatpush2.msra.mxu0 0.0
        %874 = vmatprep.subr.mxu0 0.0
        %875 = vmatpush2.msra.mxu0 0.0
        %876 = vmatprep.subr.mxu0 0.0
        %877 = vmatpush2.msra.mxu0 0.0
        %878 = vmatprep.subr.mxu0 0.0
        %879 = vmatpush2.msra.mxu0 0.0
        %880 = vmatprep.subr.mxu0 0.0
        %881 = vmatpush2.msra.mxu0 0.0
        %882 = vmatprep.subr.mxu0 0.0
        %883 = vmatpush2.msra.mxu0 0.0
        %884 = vmatprep.subr.mxu0 0.0
        %885 = vmatpush2.msra.mxu0 0.0
        %886 = vmatprep.subr.mxu0 0.0
        %887 = vmatpush2.msra.mxu0 0.0
        %888 = vmatprep.subr.mxu0 0.0
        %889 = vmatpush2.msra.mxu0 0.0
        %890 = vmatprep.subr.mxu0 0.0
        %891 = vmatpush2.msra.mxu0 0.0
        %892 = vmatprep.subr.mxu0 0.0
        %893 = vmatpush2.msra.mxu0 0.0
        %894 = vmatprep.mubr.f32.mxu0 0.0
        %895 = vmatmul.mubr.f32.gmra.mxu0 %v653
        %v896 = vpop.f32.mrf.mxu0
        %v897 = vadd.f32 0.0, %v896
        %v898 = vpop.f32.mrf.mxu0
        %899 = vmatprep.mubr.f32.mxu0 0.0
        %900 = vmatmul.mubr.f32.gmra.mxu0 %v656
        %v901 = vpop.f32.mrf.mxu0
        %v902 = vadd.f32 0.0, %v901
        %v903 = vpop.f32.mrf.mxu0
        %904 = vdwg.mxu0
        %v905 = vmul.f32 %v298, %v737
        %v906 = vmul.f32 %v299, %v742
        %v907 = vmul.f32 %v298, %v897
        %v908 = vmul.f32 %v299, %v902
        %911 = vrot.lane.b32.xlu0 %v737, 32
        %v912 = vpop.permute.xlu0 %911
        %913 = vrot.lane.b32.xlu0 %v742, 32
        %v914 = vpop.permute.xlu0 %913
        %919 = vrot.lane.b32.xlu0 %v905, 64
        %v920 = vpop.permute.xlu0 %919
        %921 = vrot.lane.b32.xlu0 %v906, 64
        %v922 = vpop.permute.xlu0 %921
        %927 = vrot.lane.b32.xlu0 %v907, 96
        %v928 = vpop.permute.xlu0 %927
        %929 = vrot.lane.b32.xlu0 %v908, 96
        %v930 = vpop.permute.xlu0 %929
        %v933 = vsel %vm332, %v298, %v912
        %v934 = vsel %vm332, %v299, %v914
        %vm935 = vcmask 523264
        %v936 = vsel %vm935, %v933, %v920
        %v937 = vsel %vm935, %v934, %v922
        %vm938 = vcmask 785408
        %v939 = vsel %vm938, %v936, %v928
        %v940 = vsel %vm938, %v937, %v930
        %941 = vst [vmem:[%s254] sm:$0xff] %v939
        %942 = vst [vmem:[%s254 + $0x8] sm:$0xff] %v940
        %s943 = sand.u32 %s152, 1
        %s944 = scalar_lea.sflag [#allocation3], %s943
        %s945 = sand.u32 %s152, 1
        %s946 = smul.addr %s945, 16
        %s947 = scalar_lea.vmem [#allocation2], %s946
        // Predicated region
        $region41: #{tpu_custom_call.1} parent=39 // pred_check
          %p948 = pneg %p162
        $region42: #{tpu_custom_call.1} parent=39 // pred_check_branch
          %950 = sbr.rel (%p948) target = $region44
        $region43: #{tpu_custom_call.1} parent=39 // pred_region
          %s952 = ssub.s32 256, 256
          %953 = vsyncadd %s944, %s952
          %s954 = smul.addr %s19, 2
          %s955 = smul.addr %s954, 128
          %s956 = scalar_lea.hbm %s5, %s955
          %s957 = sshll.u32 %s947, 4
          %s958 = int_to_ptr.vmem [resolvable:$true] %s957
          %963 = dma.vmem_to_hbm [thread:$0]  %s958, 256, %s956, %s944, 128, 128, 8
        $region44: #{tpu_custom_call.1} parent=39 // pred_fallthru
          _
      $region40: #{tpu_custom_call.1} parent=5 // pred_fallthru
        _
      %p964 = scmp.le.s32.totalorder 2, %s14
      // Predicated region
      $region45: #{tpu_custom_call.1} parent=5 // pred_check
        %p965 = pneg %p964
      $region46: #{tpu_custom_call.1} parent=5 // pred_check_branch
        %967 = sbr.rel (%p965) target = $region48
      $region47: #{tpu_custom_call.1} parent=5 // pred_region
        %s968 = ssub.s32 %s14, 2
        // Predicated region
        $region49: #{tpu_custom_call.1} parent=47 // pred_check
          %p969 = pneg %p168
        $region50: #{tpu_custom_call.1} parent=47 // pred_check_branch
          %971 = sbr.rel (%p969) target = $region52
        $region51: #{tpu_custom_call.1} parent=47 // pred_region
          %s972 = sand.u32 %s153, 1
          %s973 = scalar_lea.sflag [#allocation3], %s972
          %s974 = sand.u32 %s153, 1
          %s975 = smul.addr %s974, 16
          %s976 = scalar_lea.vmem [#allocation2], %s975
          %977 = dma.done %s973, 256
        $region52: #{tpu_custom_call.1} parent=47 // pred_fallthru
          _
      $region48: #{tpu_custom_call.1} parent=5 // pred_fallthru
        _
    $region6: #{tpu_custom_call.1} parent=1 // loop_footer
      %s18 = sadd.s32 1, %s14
    $region7: #{tpu_custom_call.1} parent=1 // loop_footer_branch
      %13 = sbr.rel target = $region3
    $region8: #{tpu_custom_call.1} parent=1 // loop_exit
      _
    %978 = vsyncpa [#allocation3], 1
    %s979 = scalar_lea.sflag [#allocation3], 1
    %980 = vsyncpa %s979, 1

</llo_original>
